<compile_context>
chip_gen: v7x
topology: tpu7x:2x2x1
jax: 0.10.0
libtpu: 0.0.40
codegen_flags: <defaults>
</compile_context>

<pallas_src>
import jax
import jax.numpy as jnp
import numpy as np
from jax.experimental import pallas as pl
from jax.experimental.pallas import tpu as pltpu

BN_EPS = 1e-5
N_PAD = 128          # lane-dense width all layers are padded to
NEG_BIG = -1e30      # bias for padded logit columns (exp -> 0 after max-shift)
MAX_TILE_B = 8192    # ~12 MiB VMEM working set w/ double buffering; under 32 MiB default


# --------------------------------------------------------------------------- #
# Kernel
# --------------------------------------------------------------------------- #
def _make_mlp_kernel(num_linear_layers: int):
    """kernel(x_ref, w0..w{L-1}, bias_slab, out_ref): softmax(MLP(x)) lane-dense."""

    def kernel(*refs):
        x_ref = refs[0]
        out_ref = refs[-1]
        b_slab_ref = refs[-2]                 # (L, N_PAD) f32, BN/bias folded
        w_refs = refs[1:-2]                   # L bf16 weights, all (*, N_PAD)

        biases = b_slab_ref[...]              # load bias slab once (tiny)
        h = x_ref[...]                        # already bf16 (cast in wrapper)

        logits = None
        for i in range(num_linear_layers):
            z = jnp.dot(h, w_refs[i][...], preferred_element_type=jnp.float32)
            z = z + biases[i:i + 1, :]
            if i < num_linear_layers - 1:
                # ReLU (Dropout(0.3) is identity in eval mode)
                h = jnp.maximum(z, 0.0).astype(jnp.bfloat16)
            else:
                logits = z                    # padded columns sit at -1e30

        # Softmax over the (lane-dense, padded) feature axis — all math in f32,
        # only the final store is bf16.
        mx = jnp.max(logits, axis=-1, keepdims=True)
        e = jnp.exp(logits - mx)              # padded lanes -> exp(-huge) = 0
        inv = pl.reciprocal(jnp.sum(e, axis=-1, keepdims=True), approx=True)
        out_ref[...] = (e * inv).astype(out_ref.dtype)

    return kernel


# --------------------------------------------------------------------------- #
# Parameter preparation: fold BN, pad to 128 lanes, cast weights to bf16
# --------------------------------------------------------------------------- #
def prepare_kernel_params(params, depth, input_size, output_size):
    """params: flat torch-like list [W,b,gamma,beta,mean,var]*depth + [Wf,bf]."""
    weights = []
    biases = []
    din_padded = input_size
    for i in range(depth):
        w, b, gamma, beta, rmean, rvar = params[i * 6:(i + 1) * 6]
        din, dout = w.shape
        scale = gamma * jax.lax.rsqrt(rvar + BN_EPS)                # (1, dout)
        w_f = w * scale                                             # fold BN
        b_f = (b - rmean) * scale + beta                            # (1, dout)
        w_pad = jnp.zeros((din_padded, N_PAD), jnp.float32).at[:din, :dout].set(w_f)
        b_pad = jnp.zeros((N_PAD,), jnp.float32).at[:dout].set(b_f[0])
        weights.append(w_pad.astype(jnp.bfloat16))
        biases.append(b_pad)
        din_padded = N_PAD

    wf, bf = params[depth * 6], params[depth * 6 + 1]
    din, dout = wf.shape
    wf_pad = jnp.zeros((din_padded, N_PAD), jnp.float32).at[:din, :dout].set(wf)
    bf_pad = jnp.full((N_PAD,), NEG_BIG, jnp.float32).at[:dout].set(bf[0])
    weights.append(wf_pad.astype(jnp.bfloat16))
    biases.append(bf_pad)

    bias_slab = jnp.stack(biases, axis=0)                           # (depth+1, 128)
    return weights, bias_slab


# --------------------------------------------------------------------------- #
# Wrapper
# --------------------------------------------------------------------------- #
def _round_up(n, m):
    return ((n + m - 1) // m) * m


def _choose_tile_b(B):
    """Batch tile: multiple of 128, as large as VMEM comfortably allows, and
    at least 2 grid steps when the batch is big enough (v7x dual-TensorCore)."""
    b128 = _round_up(B, 128)
    tile = min(MAX_TILE_B, b128)
    if b128 >= 256:
        # Guarantee >=2 parallel grid steps so the batch axis can shard across
        # both v7x TensorCores (no-op on v5e/v6e: 1 TC per chip).
        tile = min(tile, _round_up(b128 // 2, 128))
    return tile


def ann_forward(x, kernel_params, output_size, *, tile_b=None, slice_output=False):
    """Fused MLP forward via one pallas_call, tiled over the batch axis.

    Returns the lane-dense padded (B, 128) bf16 probability slab by default
    (columns >= output_size are exactly zero); pass slice_output=True to get
    the compact (B, output_size) view (costs an extra HBM pass downstream).
    """
    weights, bias_slab = kernel_params
    B, IN = x.shape
    L = len(weights)

    if tile_b is None:
        tile_b = _choose_tile_b(B)
    grid_b = pl.cdiv(B, tile_b)          # partial last block handled by Pallas

    x = x.astype(jnp.bfloat16)           # consumed only as bf16; halve HBM read

    kernel = _make_mlp_kernel(L)

    in_specs = [pl.BlockSpec((tile_b, IN), lambda i: (i, 0))]
    for w in weights:
        in_specs.append(pl.BlockSpec(w.shape, lambda i: (0, 0)))   # resident
    in_specs.append(pl.BlockSpec(bias_slab.shape, lambda i: (0, 0)))
    out_spec = pl.BlockSpec((tile_b, N_PAD), lambda i: (i, 0))

    flops = 2 * B * sum(int(w.shape[0]) * int(w.shape[1]) for w in weights)
    bytes_accessed = (B * IN * 2                                # bf16 x read
                      + sum(w.size * 2 for w in weights)        # bf16 weights
                      + bias_slab.size * 4                      # f32 bias slab
                      + B * N_PAD * 2)                          # bf16 out store
    cost = pl.CostEstimate(flops=flops, transcendentals=B * N_PAD,
                           bytes_accessed=int(bytes_accessed))

    out = pl.pallas_call(
        kernel,
        out_shape=jax.ShapeDtypeStruct((B, N_PAD), jnp.bfloat16),
        grid_spec=pltpu.PrefetchScalarGridSpec(
            num_scalar_prefetch=0,
            grid=(grid_b,),
            in_specs=in_specs,
            out_specs=out_spec,
        ),
        compiler_params=pltpu.CompilerParams(dimension_semantics=("parallel",)),
        cost_estimate=cost,
    )(x, *weights, bias_slab)

    if slice_output:
        return out[:, :output_size]
    return out


# --------------------------------------------------------------------------- #
# Synthetic parameters + pure-JAX reference (torch eval-mode semantics)
# --------------------------------------------------------------------------- #
def init_params(key, input_size, output_size, depth=3, hidden_size=128):
    """Deterministic synthetic parameters mirroring ANNModel.__init__ shapes."""
    params = []
    layer_dims = []
    in_size = input_size
    hs = hidden_size
    for _ in range(depth):
        layer_dims.append((in_size, hs))
        in_size = hs
        hs = max(hs // 2, 64)
    final_in = in_size

    for (din, dout) in layer_dims:
        key, kw, kb, kg, kbe, km, kv = jax.random.split(key, 7)
        bound = 1.0 / np.sqrt(din)
        w = jax.random.uniform(kw, (din, dout), jnp.float32, -bound, bound)
        b = jax.random.uniform(kb, (1, dout), jnp.float32, -bound, bound)
        gamma = 1.0 + 0.1 * jax.random.normal(kg, (1, dout), jnp.float32)
        beta = 0.1 * jax.random.normal(kbe, (1, dout), jnp.float32)
        rmean = 0.1 * jax.random.normal(km, (1, dout), jnp.float32)
        rvar = jax.random.uniform(kv, (1, dout), jnp.float32, 0.5, 1.5)
        params.extend([w, b, gamma, beta, rmean, rvar])

    key, kw, kb = jax.random.split(key, 3)
    bound = 1.0 / np.sqrt(final_in)
    wf = jax.random.uniform(kw, (final_in, output_size), jnp.float32, -bound, bound)
    bf = jax.random.uniform(kb, (1, output_size), jnp.float32, -bound, bound)
    params.extend([wf, bf])
    return params


def reference_forward(x, params, depth):
    """Pure-JAX f32 reference (eval-mode BN, identity dropout, softmax)."""
    h = x.astype(jnp.float32)
    for i in range(depth):
        w, b, g, be, m, v = params[i * 6:(i + 1) * 6]
        z = h @ w + b
        z = (z - m) / jnp.sqrt(v + BN_EPS) * g + be
        h = jnp.maximum(z, 0.0)
    logits = h @ params[depth * 6] + params[depth * 6 + 1]
    return jax.nn.softmax(logits, axis=1)


if __name__ == "__main__":
    INPUT_SIZE = 16
    OUTPUT_SIZE = 4
    DEPTH = 3
    HIDDEN = 128
    BATCH = 8

    key = jax.random.PRNGKey(0)
    kx, kp = jax.random.split(key)
    x = jax.random.normal(kx, (BATCH, INPUT_SIZE), jnp.float32)
    params = init_params(kp, INPUT_SIZE, OUTPUT_SIZE, depth=DEPTH, hidden_size=HIDDEN)

    kparams = prepare_kernel_params(params, DEPTH, INPUT_SIZE, OUTPUT_SIZE)

    # Default (recommended) path: consume the lane-dense padded bf16 slab.
    out_padded = jax.block_until_ready(ann_forward(x, kparams, OUTPUT_SIZE))

    ref = jax.block_until_ready(reference_forward(x, params, DEPTH))
    # bf16 matmul operands + bf16 output store (f32 accumulate / softmax math)
    # -> loosened tolerance on probabilities.
    out_np = np.asarray(out_padded[:, :OUTPUT_SIZE].astype(jnp.float32))
    np.testing.assert_allclose(out_np, np.asarray(ref), rtol=0.0, atol=2e-2)
    # Padded probability columns must be exactly zero.
    pad_np = np.asarray(out_padded[:, OUTPUT_SIZE:].astype(jnp.float32))
    np.testing.assert_allclose(pad_np, 0.0, rtol=0.0, atol=0.0)

    print("KERNEL_OK")
</pallas_src>

<mosaic_0001>
module attributes {stable_mosaic.version = 11 : i64} {
  func.func @kernel(%arg0: i32, %arg1: memref<128x16xbf16, #tpu.memory_space<vmem>>, %arg2: memref<16x128xbf16, #tpu.memory_space<vmem>>, %arg3: memref<128x128xbf16, #tpu.memory_space<vmem>>, %arg4: memref<128x128xbf16, #tpu.memory_space<vmem>>, %arg5: memref<128x128xbf16, #tpu.memory_space<vmem>>, %arg6: memref<4x128xf32, #tpu.memory_space<vmem>>, %arg7: memref<128x128xbf16, #tpu.memory_space<vmem>>) attributes {dimension_semantics = [#tpu.dimension_semantics<parallel>], iteration_bounds = array<i64: 1>, scalar_prefetch = 0 : i64, scratch_operands = 0 : i64, tpu.core_type = #tpu.core_type<tc>, window_params = [{transform_indices = @transform_0, window_bounds = array<i64: 128, 16>}, {pipeline_mode = #tpu.pipeline_mode<synchronous>, transform_indices = @transform_1, window_bounds = array<i64: 16, 128>}, {pipeline_mode = #tpu.pipeline_mode<synchronous>, transform_indices = @transform_2, window_bounds = array<i64: 128, 128>}, {pipeline_mode = #tpu.pipeline_mode<synchronous>, transform_indices = @transform_3, window_bounds = array<i64: 128, 128>}, {pipeline_mode = #tpu.pipeline_mode<synchronous>, transform_indices = @transform_4, window_bounds = array<i64: 128, 128>}, {pipeline_mode = #tpu.pipeline_mode<synchronous>, transform_indices = @transform_5, window_bounds = array<i64: 4, 128>}, {transform_indices = @transform_6, window_bounds = array<i64: 128, 128>}]} {
    %c0 = arith.constant 0 : index
    %c0_0 = arith.constant 0 : index
    %0 = vector.load %arg6[%c0, %c0_0] : memref<4x128xf32, #tpu.memory_space<vmem>>, vector<4x128xf32>
    %c0_1 = arith.constant 0 : index
    %c0_2 = arith.constant 0 : index
    %1 = vector.load %arg1[%c0_1, %c0_2] : memref<128x16xbf16, #tpu.memory_space<vmem>>, vector<128x16xbf16>
    %c0_3 = arith.constant 0 : index
    %c0_4 = arith.constant 0 : index
    %2 = vector.load %arg2[%c0_3, %c0_4] : memref<16x128xbf16, #tpu.memory_space<vmem>>, vector<16x128xbf16>
    %cst = arith.constant dense<0.000000e+00> : vector<128x128xf32>
    %3 = tpu.matmul %1, %2, %cst {dimension_numbers = #tpu.dot_dimension_numbers<[1], [0], [0], [1], [0, 0, 1, 1], [], []>} : vector<128x16xbf16>, vector<16x128xbf16>, vector<128x128xf32> -> vector<128x128xf32>
    %4 = vector.extract_strided_slice %0 {offsets = [0, 0], sizes = [1, 128], strides = [1, 1]} : vector<4x128xf32> to vector<1x128xf32>
    %5 = vector.broadcast %4 : vector<1x128xf32> to vector<128x128xf32>
    %6 = arith.addf %3, %5 : vector<128x128xf32>
    %cst_5 = arith.constant 0.000000e+00 : f32
    %7 = vector.broadcast %cst_5 : f32 to vector<128x128xf32>
    %8 = arith.maximumf %6, %7 : vector<128x128xf32>
    %9 = arith.truncf %8 : vector<128x128xf32> to vector<128x128xbf16>
    %c0_6 = arith.constant 0 : index
    %c0_7 = arith.constant 0 : index
    %10 = vector.load %arg3[%c0_6, %c0_7] : memref<128x128xbf16, #tpu.memory_space<vmem>>, vector<128x128xbf16>
    %cst_8 = arith.constant dense<0.000000e+00> : vector<128x128xf32>
    %11 = tpu.matmul %9, %10, %cst_8 {dimension_numbers = #tpu.dot_dimension_numbers<[1], [0], [0], [1], [0, 0, 1, 1], [], []>} : vector<128x128xbf16>, vector<128x128xbf16>, vector<128x128xf32> -> vector<128x128xf32>
    %12 = vector.extract_strided_slice %0 {offsets = [1, 0], sizes = [1, 128], strides = [1, 1]} : vector<4x128xf32> to vector<1x128xf32>
    %13 = vector.broadcast %12 : vector<1x128xf32> to vector<128x128xf32>
    %14 = arith.addf %11, %13 : vector<128x128xf32>
    %cst_9 = arith.constant 0.000000e+00 : f32
    %15 = vector.broadcast %cst_9 : f32 to vector<128x128xf32>
    %16 = arith.maximumf %14, %15 : vector<128x128xf32>
    %17 = arith.truncf %16 : vector<128x128xf32> to vector<128x128xbf16>
    %c0_10 = arith.constant 0 : index
    %c0_11 = arith.constant 0 : index
    %18 = vector.load %arg4[%c0_10, %c0_11] : memref<128x128xbf16, #tpu.memory_space<vmem>>, vector<128x128xbf16>
    %cst_12 = arith.constant dense<0.000000e+00> : vector<128x128xf32>
    %19 = tpu.matmul %17, %18, %cst_12 {dimension_numbers = #tpu.dot_dimension_numbers<[1], [0], [0], [1], [0, 0, 1, 1], [], []>} : vector<128x128xbf16>, vector<128x128xbf16>, vector<128x128xf32> -> vector<128x128xf32>
    %20 = vector.extract_strided_slice %0 {offsets = [2, 0], sizes = [1, 128], strides = [1, 1]} : vector<4x128xf32> to vector<1x128xf32>
    %21 = vector.broadcast %20 : vector<1x128xf32> to vector<128x128xf32>
    %22 = arith.addf %19, %21 : vector<128x128xf32>
    %cst_13 = arith.constant 0.000000e+00 : f32
    %23 = vector.broadcast %cst_13 : f32 to vector<128x128xf32>
    %24 = arith.maximumf %22, %23 : vector<128x128xf32>
    %25 = arith.truncf %24 : vector<128x128xf32> to vector<128x128xbf16>
    %c0_14 = arith.constant 0 : index
    %c0_15 = arith.constant 0 : index
    %26 = vector.load %arg5[%c0_14, %c0_15] : memref<128x128xbf16, #tpu.memory_space<vmem>>, vector<128x128xbf16>
    %cst_16 = arith.constant dense<0.000000e+00> : vector<128x128xf32>
    %27 = tpu.matmul %25, %26, %cst_16 {dimension_numbers = #tpu.dot_dimension_numbers<[1], [0], [0], [1], [0, 0, 1, 1], [], []>} : vector<128x128xbf16>, vector<128x128xbf16>, vector<128x128xf32> -> vector<128x128xf32>
    %28 = vector.extract_strided_slice %0 {offsets = [3, 0], sizes = [1, 128], strides = [1, 1]} : vector<4x128xf32> to vector<1x128xf32>
    %29 = vector.broadcast %28 : vector<1x128xf32> to vector<128x128xf32>
    %30 = arith.addf %27, %29 : vector<128x128xf32>
    %cst_17 = arith.constant dense<0xFF800000> : vector<128xf32>
    %31 = vector.multi_reduction <maximumf>, %30, %cst_17 [1] : vector<128x128xf32> to vector<128xf32>
    %32 = vector.shape_cast %31 : vector<128xf32> to vector<128x1xf32>
    %33 = vector.broadcast %32 : vector<128x1xf32> to vector<128x128xf32>
    %34 = arith.subf %30, %33 : vector<128x128xf32>
    %35 = math.exp %34 : vector<128x128xf32>
    %cst_18 = arith.constant dense<0.000000e+00> : vector<128xf32>
    %36 = vector.multi_reduction <add>, %35, %cst_18 [1] : vector<128x128xf32> to vector<128xf32>
    %37 = vector.shape_cast %36 : vector<128xf32> to vector<128x1xf32>
    %38 = tpu.reciprocal %37 {approx = true} : vector<128x1xf32> -> vector<128x1xf32>
    %39 = vector.broadcast %38 : vector<128x1xf32> to vector<128x128xf32>
    %40 = arith.mulf %35, %39 : vector<128x128xf32>
    %41 = arith.truncf %40 : vector<128x128xf32> to vector<128x128xbf16>
    %c0_19 = arith.constant 0 : index
    %c0_20 = arith.constant 0 : index
    %42 = vector.load %arg7[%c0_19, %c0_20] : memref<128x128xbf16, #tpu.memory_space<vmem>>, vector<128x128xbf16>
    tpu.vector_store %arg7[%c0_19, %c0_20], %41 {strides = array<i32>} : memref<128x128xbf16, #tpu.memory_space<vmem>>, vector<128x128xbf16>,
    return
  }
  func.func @transform_0(%arg0: i32) -> (i32, i32) {
    %c0_i32 = arith.constant 0 : i32
    %c0_i32_0 = arith.constant 0 : i32
    return %arg0, %c0_i32 : i32, i32
  }
  func.func @transform_1(%arg0: i32) -> (i32, i32) {
    %c0_i32 = arith.constant 0 : i32
    %c0_i32_0 = arith.constant 0 : i32
    %c0_i32_1 = arith.constant 0 : i32
    return %c0_i32, %c0_i32_0 : i32, i32
  }
  func.func @transform_2(%arg0: i32) -> (i32, i32) {
    %c0_i32 = arith.constant 0 : i32
    %c0_i32_0 = arith.constant 0 : i32
    %c0_i32_1 = arith.constant 0 : i32
    return %c0_i32, %c0_i32_0 : i32, i32
  }
  func.func @transform_3(%arg0: i32) -> (i32, i32) {
    %c0_i32 = arith.constant 0 : i32
    %c0_i32_0 = arith.constant 0 : i32
    %c0_i32_1 = arith.constant 0 : i32
    return %c0_i32, %c0_i32_0 : i32, i32
  }
  func.func @transform_4(%arg0: i32) -> (i32, i32) {
    %c0_i32 = arith.constant 0 : i32
    %c0_i32_0 = arith.constant 0 : i32
    %c0_i32_1 = arith.constant 0 : i32
    return %c0_i32, %c0_i32_0 : i32, i32
  }
  func.func @transform_5(%arg0: i32) -> (i32, i32) {
    %c0_i32 = arith.constant 0 : i32
    %c0_i32_0 = arith.constant 0 : i32
    %c0_i32_1 = arith.constant 0 : i32
    return %c0_i32, %c0_i32_0 : i32, i32
  }
  func.func @transform_6(%arg0: i32) -> (i32, i32) {
    %c0_i32 = arith.constant 0 : i32
    %c0_i32_0 = arith.constant 0 : i32
    return %arg0, %c0_i32 : i32, i32
  }
}

</mosaic_0001>

<llo_original>
// kernel: tpu_custom_call.1
$region0: #{tpu_custom_call.1}
  #allocation0 [shape = 'u32[]', space=smem, size = 0x4, offset = 0x4, fixed_abs, tag = 'smem constant byte address 0x4 - core index']
  #allocation1 [shape = 'u32[144,128]{1,0:T(1,128)}', space=vmem, size = 0x12000, scoped, tag = 'internal scratch']
  %s0 = inlined_call_operand.hbm [shape: bf16[8,16], index: 0, kind: input, shape index: {}]
  %s1 = inlined_call_operand.hbm [shape: bf16[16,128], index: 1, kind: input, shape index: {}]
  %s2 = inlined_call_operand.hbm [shape: bf16[128,128], index: 2, kind: input, shape index: {}]
  %s3 = inlined_call_operand.hbm [shape: bf16[128,128], index: 3, kind: input, shape index: {}]
  %s4 = inlined_call_operand.hbm [shape: bf16[128,128], index: 4, kind: input, shape index: {}]
  %s5 = inlined_call_operand.vmem [shape: f32[4,128], index: 5, kind: input, shape index: {}]
  %s6 = inlined_call_operand.hbm [shape: bf16[8,128], index: 6, kind: output, shape index: {}]
  %s7 = sld [smem:[#allocation0]]
  $region54: #{tpu_custom_call.1} parent=0
    _
  %s9 = ssub.s32 1, %s7
  %s10 = scalar_select 0, %s9, %s7
  $region1: #{tpu_custom_call.1} parent=0
    #allocation2 [shape = 'u8[32768]{0}', space=vmem, size = 0x8000, scoped, tag = 'input window, operand 0, single buffered']
    #allocation3 [shape = 's32[1]{0}', space=sflag, size = 0x4, scoped, tag = 'scoped memory for tpu_custom_call.1']
    #allocation4 [shape = 's32[1]{0}', space=sflag, size = 0x4, scoped, tag = 'scoped memory for tpu_custom_call.1']
    #allocation5 [shape = 'u8[4096]{0}', space=vmem, size = 0x1000, scoped, tag = 'input window, operand 1, single buffered']
    #allocation6 [shape = 's32[1]{0}', space=sflag, size = 0x4, scoped, tag = 'scoped memory for tpu_custom_call.1']
    #allocation7 [shape = 'u8[32768]{0}', space=vmem, size = 0x8000, scoped, tag = 'input window, operand 2, single buffered']
    #allocation8 [shape = 'u8[32768]{0}', space=vmem, size = 0x8000, scoped, tag = 'input window, operand 3, single buffered']
    #allocation9 [shape = 's32[1]{0}', space=sflag, size = 0x4, scoped, tag = 'scoped memory for tpu_custom_call.1']
    #allocation10 [shape = 'u8[32768]{0}', space=vmem, size = 0x8000, scoped, tag = 'input window, operand 4, single buffered']
    #allocation11 [shape = 'u8[32768]{0}', space=vmem, size = 0x8000, scoped, tag = 'output window, operand 0, single buffered']
    %11 = vsyncpa [#allocation3], 0
    %12 = vsyncpa [#allocation6], 0
    %13 = vsyncpa [#allocation9], 0
    %14 = vsyncpa [#allocation4], 0
    // Predicated region
    $region2: #{tpu_custom_call.1} parent=1 // pred_check
      _
    $region3: #{tpu_custom_call.1} parent=1 // pred_check_branch
      %16 = sbr.rel (0) target = $region5
    $region4: #{tpu_custom_call.1} parent=1 // pred_region
      %s18 = ssub.s32 1024, 64
      %19 = vsyncadd [#allocation3], %s18
      %s20 = sshll.u32 [#allocation2], 4
      %s21 = int_to_ptr.vmem [resolvable:$true] %s20
      %26 = dma.hbm_to_vmem [thread:$0]  %s0, 64, %s21, [#allocation3], 64, 64, 4
    $region5: #{tpu_custom_call.1} parent=1 // pred_fallthru
      _
    // Predicated region
    $region6: #{tpu_custom_call.1} parent=1 // pred_check
      _
    $region7: #{tpu_custom_call.1} parent=1 // pred_check_branch
      %28 = sbr.rel (0) target = $region9
    $region8: #{tpu_custom_call.1} parent=1 // pred_region
      %s30 = ssub.s32 128, 128
      %31 = vsyncadd [#allocation6], %s30
      %s32 = sshll.u32 [#allocation5], 4
      %s33 = int_to_ptr.vmem [resolvable:$true] %s32
      %38 = dma.hbm_to_vmem [thread:$0]  %s1, 128, %s33, [#allocation6], 64, 64, 4
    $region9: #{tpu_custom_call.1} parent=1 // pred_fallthru
      _
    // Predicated region
    $region10: #{tpu_custom_call.1} parent=1 // pred_check
      _
    $region11: #{tpu_custom_call.1} parent=1 // pred_check_branch
      %40 = sbr.rel (0) target = $region13
    $region12: #{tpu_custom_call.1} parent=1 // pred_region
      %s42 = ssub.s32 1024, 1024
      %43 = vsyncadd [#allocation6], %s42
      %s44 = sshll.u32 [#allocation7], 4
      %s45 = int_to_ptr.vmem [resolvable:$true] %s44
      %50 = dma.hbm_to_vmem [thread:$0]  %s2, 1024, %s45, [#allocation6], 64, 64, 4
    $region13: #{tpu_custom_call.1} parent=1 // pred_fallthru
      _
    // Predicated region
    $region14: #{tpu_custom_call.1} parent=1 // pred_check
      _
    $region15: #{tpu_custom_call.1} parent=1 // pred_check_branch
      %52 = sbr.rel (0) target = $region17
    $region16: #{tpu_custom_call.1} parent=1 // pred_region
      %s54 = ssub.s32 1024, 1024
      %55 = vsyncadd [#allocation9], %s54
      %s56 = sshll.u32 [#allocation8], 4
      %s57 = int_to_ptr.vmem [resolvable:$true] %s56
      %62 = dma.hbm_to_vmem [thread:$0]  %s3, 1024, %s57, [#allocation9], 64, 64, 4
    $region17: #{tpu_custom_call.1} parent=1 // pred_fallthru
      _
    // Predicated region
    $region18: #{tpu_custom_call.1} parent=1 // pred_check
      _
    $region19: #{tpu_custom_call.1} parent=1 // pred_check_branch
      %64 = sbr.rel (0) target = $region21
    $region20: #{tpu_custom_call.1} parent=1 // pred_region
      %s66 = ssub.s32 1024, 1024
      %67 = vsyncadd [#allocation9], %s66
      %s68 = sshll.u32 [#allocation10], 4
      %s69 = int_to_ptr.vmem [resolvable:$true] %s68
      %74 = dma.hbm_to_vmem [thread:$0]  %s4, 1024, %s69, [#allocation9], 64, 64, 4
    $region21: #{tpu_custom_call.1} parent=1 // pred_fallthru
      _
    // Predicated region
    $region22: #{tpu_custom_call.1} parent=1 // pred_check
      _
    $region23: #{tpu_custom_call.1} parent=1 // pred_check_branch
      %76 = sbr.rel (0) target = $region25
    $region24: #{tpu_custom_call.1} parent=1 // pred_region
      _
    $region25: #{tpu_custom_call.1} parent=1 // pred_fallthru
      _
    // Predicated region
    $region26: #{tpu_custom_call.1} parent=1 // pred_check
      _
    $region27: #{tpu_custom_call.1} parent=1 // pred_check_branch
      %78 = sbr.rel (0) target = $region29
    $region28: #{tpu_custom_call.1} parent=1 // pred_region
      %79 = dma.done [#allocation3], 1024
    $region29: #{tpu_custom_call.1} parent=1 // pred_fallthru
      _
    // Predicated region
    $region30: #{tpu_custom_call.1} parent=1 // pred_check
      _
    $region31: #{tpu_custom_call.1} parent=1 // pred_check_branch
      %81 = sbr.rel (0) target = $region33
    $region32: #{tpu_custom_call.1} parent=1 // pred_region
      %82 = dma.done [#allocation6], 128
    $region33: #{tpu_custom_call.1} parent=1 // pred_fallthru
      _
    // Predicated region
    $region34: #{tpu_custom_call.1} parent=1 // pred_check
      _
    $region35: #{tpu_custom_call.1} parent=1 // pred_check_branch
      %84 = sbr.rel (0) target = $region37
    $region36: #{tpu_custom_call.1} parent=1 // pred_region
      %85 = dma.done [#allocation6], 1024
    $region37: #{tpu_custom_call.1} parent=1 // pred_fallthru
      _
    // Predicated region
    $region38: #{tpu_custom_call.1} parent=1 // pred_check
      _
    $region39: #{tpu_custom_call.1} parent=1 // pred_check_branch
      %87 = sbr.rel (0) target = $region41
    $region40: #{tpu_custom_call.1} parent=1 // pred_region
      %88 = dma.done [#allocation9], 1024
    $region41: #{tpu_custom_call.1} parent=1 // pred_fallthru
      _
    // Predicated region
    $region42: #{tpu_custom_call.1} parent=1 // pred_check
      _
    $region43: #{tpu_custom_call.1} parent=1 // pred_check_branch
      %90 = sbr.rel (0) target = $region45
    $region44: #{tpu_custom_call.1} parent=1 // pred_region
      %91 = dma.done [#allocation9], 1024
    $region45: #{tpu_custom_call.1} parent=1 // pred_fallthru
      _
    %v93 = vld [vmem:[%s5] sm:$0xf]
    %v94 = vld [vmem:[#allocation2] sm:$0xf]
    %v95 = vld [vmem:[#allocation2 + $0x4] sm:$0xf]
    %v96 = vld [vmem:[#allocation2 + $0x8] sm:$0xf]
    %v97 = vld [vmem:[#allocation2 + $0xc] sm:$0xf]
    %v98 = vld [vmem:[#allocation2 + $0x10] sm:$0xf]
    %v99 = vld [vmem:[#allocation2 + $0x14] sm:$0xf]
    %v100 = vld [vmem:[#allocation2 + $0x18] sm:$0xf]
    %v101 = vld [vmem:[#allocation2 + $0x1c] sm:$0xf]
    %v102 = vld [vmem:[#allocation2 + $0x20] sm:$0xf]
    %v103 = vld [vmem:[#allocation2 + $0x24] sm:$0xf]
    %v104 = vld [vmem:[#allocation2 + $0x28] sm:$0xf]
    %v105 = vld [vmem:[#allocation2 + $0x2c] sm:$0xf]
    %v106 = vld [vmem:[#allocation2 + $0x30] sm:$0xf]
    %v107 = vld [vmem:[#allocation2 + $0x34] sm:$0xf]
    %v108 = vld [vmem:[#allocation2 + $0x38] sm:$0xf]
    %v109 = vld [vmem:[#allocation2 + $0x3c] sm:$0xf]
    %v110 = vld [vmem:[#allocation5] sm:$0xf]
    %v111 = vld [vmem:[#allocation5 + $0x4] sm:$0xf]
    %v112 = vlaneseq
    %v113 = vshrl.u32 %v112, 7
    %v114 = vsub.s32 0, %v113
    %v115 = vrot.slane %v93, %v114
    %v132 = vunpack.c.l.b16 %v94
    %v133 = vunpack.c.l.b16 %v95
    %v134 = vunpack.c.l.b16 %v96
    %v135 = vunpack.c.l.b16 %v97
    %v136 = vunpack.c.l.b16 %v98
    %v137 = vunpack.c.l.b16 %v99
    %v138 = vunpack.c.l.b16 %v100
    %v139 = vunpack.c.l.b16 %v101
    %v140 = vunpack.c.l.b16 %v102
    %v141 = vunpack.c.l.b16 %v103
    %v142 = vunpack.c.l.b16 %v104
    %v143 = vunpack.c.l.b16 %v105
    %v144 = vunpack.c.l.b16 %v106
    %v145 = vunpack.c.l.b16 %v107
    %v146 = vunpack.c.l.b16 %v108
    %v147 = vunpack.c.l.b16 %v109
    %v148 = vpack.c.b16 %v133, %v132
    %v149 = vpack.c.b16 %v135, %v134
    %v150 = vpack.c.b16 %v137, %v136
    %v151 = vpack.c.b16 %v139, %v138
    %v152 = vpack.c.b16 %v141, %v140
    %v153 = vpack.c.b16 %v143, %v142
    %v154 = vpack.c.b16 %v145, %v144
    %v155 = vpack.c.b16 %v147, %v146
    %v158 = vunpack.c.l.b16 %v110
    %v159 = vunpack.c.l.b16 %v111
    %v160 = vpack.c.b16 %v159, %v158
    %vm162 = vcmask 130048
    %v164 = vsel %vm162, %v148, 0
    %v167 = vsel %vm162, %v149, 0
    %v170 = vsel %vm162, %v150, 0
    %v173 = vsel %vm162, %v151, 0
    %v176 = vsel %vm162, %v152, 0
    %v179 = vsel %vm162, %v153, 0
    %v182 = vsel %vm162, %v154, 0
    %v185 = vsel %vm162, %v155, 0
    %187 = vmatprep.subr.bf16.mxu0 0
    %188 = vmatpush1.bf16.msra.mxu0 %v160
    %189 = vmatprep.subr.bf16.mxu0 0
    %190 = vmatpush1.bf16.msra.mxu0 0
    %191 = vmatprep.subr.bf16.mxu0 0
    %192 = vmatpush1.bf16.msra.mxu0 0
    %193 = vmatprep.subr.bf16.mxu0 0
    %194 = vmatpush1.bf16.msra.mxu0 0
    %195 = vmatprep.subr.bf16.mxu0 0
    %196 = vmatpush1.bf16.msra.mxu0 0
    %197 = vmatprep.subr.bf16.mxu0 0
    %198 = vmatpush1.bf16.msra.mxu0 0
    %199 = vmatprep.subr.bf16.mxu0 0
    %200 = vmatpush1.bf16.msra.mxu0 0
    %201 = vmatprep.subr.bf16.mxu0 0
    %202 = vmatpush1.bf16.msra.mxu0 0
    %203 = vmatprep.subr.bf16.mxu0 0
    %204 = vmatpush1.bf16.msra.mxu0 0
    %205 = vmatprep.subr.bf16.mxu0 0
    %206 = vmatpush1.bf16.msra.mxu0 0
    %207 = vmatprep.subr.bf16.mxu0 0
    %208 = vmatpush1.bf16.msra.mxu0 0
    %209 = vmatprep.subr.bf16.mxu0 0
    %210 = vmatpush1.bf16.msra.mxu0 0
    %211 = vmatprep.subr.bf16.mxu0 0
    %212 = vmatpush1.bf16.msra.mxu0 0
    %213 = vmatprep.subr.bf16.mxu0 0
    %214 = vmatpush1.bf16.msra.mxu0 0
    %215 = vmatprep.subr.bf16.mxu0 0
    %216 = vmatpush1.bf16.msra.mxu0 0
    %217 = vmatprep.subr.bf16.mxu0 0
    %218 = vmatpush1.bf16.msra.mxu0 0
    %219 = vmatprep.mubr.bf16.mxu0 0
    %220 = vmatmul.mubr.bf16.gmra.mrb[0].mxu0 %v164
    %v221 = vpop.f32.mrb[0].mxu0
    %v222 = vadd.f32 %v115, %v221
    %v223 = vpop.f32.mrb[0].mxu0
    %v224 = vpop.f32.mrb[0].mxu0
    %v225 = vadd.f32 %v115, %v224
    %v226 = vpop.f32.mrb[0].mxu0
    %227 = vmatprep.mubr.bf16.mxu0 0
    %228 = vmatmul.mubr.bf16.gmra.mrb[0].mxu0 %v167
    %v229 = vpop.f32.mrb[0].mxu0
    %v230 = vadd.f32 %v115, %v229
    %v231 = vpop.f32.mrb[0].mxu0
    %v232 = vpop.f32.mrb[0].mxu0
    %v233 = vadd.f32 %v115, %v232
    %v234 = vpop.f32.mrb[0].mxu0
    %235 = vmatprep.mubr.bf16.mxu0 0
    %236 = vmatmul.mubr.bf16.gmra.mrb[0].mxu0 %v170
    %v237 = vpop.f32.mrb[0].mxu0
    %v238 = vadd.f32 %v115, %v237
    %v239 = vpop.f32.mrb[0].mxu0
    %v240 = vpop.f32.mrb[0].mxu0
    %v241 = vadd.f32 %v115, %v240
    %v242 = vpop.f32.mrb[0].mxu0
    %243 = vmatprep.mubr.bf16.mxu0 0
    %244 = vmatmul.mubr.bf16.gmra.mrb[0].mxu0 %v173
    %v245 = vpop.f32.mrb[0].mxu0
    %v246 = vadd.f32 %v115, %v245
    %v247 = vpop.f32.mrb[0].mxu0
    %v248 = vpop.f32.mrb[0].mxu0
    %v249 = vadd.f32 %v115, %v248
    %v250 = vpop.f32.mrb[0].mxu0
    %251 = vmatprep.mubr.bf16.mxu0 0
    %252 = vmatmul.mubr.bf16.gmra.mrb[0].mxu0 %v176
    %v253 = vpop.f32.mrb[0].mxu0
    %v254 = vadd.f32 %v115, %v253
    %v255 = vpop.f32.mrb[0].mxu0
    %v256 = vpop.f32.mrb[0].mxu0
    %v257 = vadd.f32 %v115, %v256
    %v258 = vpop.f32.mrb[0].mxu0
    %259 = vmatprep.mubr.bf16.mxu0 0
    %260 = vmatmul.mubr.bf16.gmra.mrb[0].mxu0 %v179
    %v261 = vpop.f32.mrb[0].mxu0
    %v262 = vadd.f32 %v115, %v261
    %v263 = vpop.f32.mrb[0].mxu0
    %v264 = vpop.f32.mrb[0].mxu0
    %v265 = vadd.f32 %v115, %v264
    %v266 = vpop.f32.mrb[0].mxu0
    %267 = vmatprep.mubr.bf16.mxu0 0
    %268 = vmatmul.mubr.bf16.gmra.mrb[0].mxu0 %v182
    %v269 = vpop.f32.mrb[0].mxu0
    %v270 = vadd.f32 %v115, %v269
    %v271 = vpop.f32.mrb[0].mxu0
    %v272 = vpop.f32.mrb[0].mxu0
    %v273 = vadd.f32 %v115, %v272
    %v274 = vpop.f32.mrb[0].mxu0
    %275 = vmatprep.mubr.bf16.mxu0 0
    %276 = vmatmul.mubr.bf16.gmra.mrb[0].mxu0 %v185
    %v277 = vpop.f32.mrb[0].mxu0
    %v278 = vadd.f32 %v115, %v277
    %v279 = vpop.f32.mrb[0].mxu0
    %v280 = vpop.f32.mrb[0].mxu0
    %v281 = vadd.f32 %v115, %v280
    %v282 = vpop.f32.mrb[0].mxu0
    %283 = vdwg.mxu0
    %v284 = vmax.f32 %v222, 0.0
    %v285 = vmax.f32 %v225, 0.0
    %v286 = vmax.f32 %v230, 0.0
    %v287 = vmax.f32 %v233, 0.0
    %v288 = vmax.f32 %v238, 0.0
    %v289 = vmax.f32 %v241, 0.0
    %v290 = vmax.f32 %v246, 0.0
    %v291 = vmax.f32 %v249, 0.0
    %v292 = vmax.f32 %v254, 0.0
    %v293 = vmax.f32 %v257, 0.0
    %v294 = vmax.f32 %v262, 0.0
    %v295 = vmax.f32 %v265, 0.0
    %v296 = vmax.f32 %v270, 0.0
    %v297 = vmax.f32 %v273, 0.0
    %v298 = vmax.f32 %v278, 0.0
    %v299 = vmax.f32 %v281, 0.0
    %v300 = vpack.c.bf16 %v285, %v284
    %v301 = vpack.c.bf16 %v287, %v286
    %v302 = vpack.c.bf16 %v289, %v288
    %v303 = vpack.c.bf16 %v291, %v290
    %v304 = vpack.c.bf16 %v293, %v292
    %v305 = vpack.c.bf16 %v295, %v294
    %v306 = vpack.c.bf16 %v297, %v296
    %v307 = vpack.c.bf16 %v299, %v298
    %v308 = vld [vmem:[#allocation7] sm:$0xf]
    %v309 = vld [vmem:[#allocation7 + $0x4] sm:$0xf]
    %v310 = vld [vmem:[#allocation7 + $0x8] sm:$0xf]
    %v311 = vld [vmem:[#allocation7 + $0xc] sm:$0xf]
    %v312 = vld [vmem:[#allocation7 + $0x10] sm:$0xf]
    %v313 = vld [vmem:[#allocation7 + $0x14] sm:$0xf]
    %v314 = vld [vmem:[#allocation7 + $0x18] sm:$0xf]
    %v315 = vld [vmem:[#allocation7 + $0x1c] sm:$0xf]
    %v316 = vld [vmem:[#allocation7 + $0x20] sm:$0xf]
    %v317 = vld [vmem:[#allocation7 + $0x24] sm:$0xf]
    %v318 = vld [vmem:[#allocation7 + $0x28] sm:$0xf]
    %v319 = vld [vmem:[#allocation7 + $0x2c] sm:$0xf]
    %v320 = vld [vmem:[#allocation7 + $0x30] sm:$0xf]
    %v321 = vld [vmem:[#allocation7 + $0x34] sm:$0xf]
    %v322 = vld [vmem:[#allocation7 + $0x38] sm:$0xf]
    %v323 = vld [vmem:[#allocation7 + $0x3c] sm:$0xf]
    %v324 = vlaneseq
    %v325 = vshrl.u32 %v324, 7
    %v326 = vsub.s32 1, %v325
    %v327 = vrot.slane %v93, %v326
    %v344 = vunpack.c.l.b16 %v308
    %v345 = vunpack.c.l.b16 %v309
    %v346 = vunpack.c.l.b16 %v310
    %v347 = vunpack.c.l.b16 %v311
    %v348 = vunpack.c.l.b16 %v312
    %v349 = vunpack.c.l.b16 %v313
    %v350 = vunpack.c.l.b16 %v314
    %v351 = vunpack.c.l.b16 %v315
    %v352 = vunpack.c.l.b16 %v316
    %v353 = vunpack.c.l.b16 %v317
    %v354 = vunpack.c.l.b16 %v318
    %v355 = vunpack.c.l.b16 %v319
    %v356 = vunpack.c.l.b16 %v320
    %v357 = vunpack.c.l.b16 %v321
    %v358 = vunpack.c.l.b16 %v322
    %v359 = vunpack.c.l.b16 %v323
    %v360 = vpack.c.b16 %v345, %v344
    %v361 = vpack.c.b16 %v347, %v346
    %v362 = vpack.c.b16 %v349, %v348
    %v363 = vpack.c.b16 %v351, %v350
    %v364 = vpack.c.b16 %v353, %v352
    %v365 = vpack.c.b16 %v355, %v354
    %v366 = vpack.c.b16 %v357, %v356
    %v367 = vpack.c.b16 %v359, %v358
    %376 = vmatprep.subr.bf16.mxu0 0
    %377 = vmatpush1.bf16.msra.mxu0 %v360
    %378 = vmatprep.subr.bf16.mxu0 0
    %379 = vmatpush1.bf16.msra.mxu0 %v361
    %380 = vmatprep.subr.bf16.mxu0 0
    %381 = vmatpush1.bf16.msra.mxu0 %v362
    %382 = vmatprep.subr.bf16.mxu0 0
    %383 = vmatpush1.bf16.msra.mxu0 %v363
    %384 = vmatprep.subr.bf16.mxu0 0
    %385 = vmatpush1.bf16.msra.mxu0 %v364
    %386 = vmatprep.subr.bf16.mxu0 0
    %387 = vmatpush1.bf16.msra.mxu0 %v365
    %388 = vmatprep.subr.bf16.mxu0 0
    %389 = vmatpush1.bf16.msra.mxu0 %v366
    %390 = vmatprep.subr.bf16.mxu0 0
    %391 = vmatpush1.bf16.msra.mxu0 %v367
    %392 = vmatprep.subr.bf16.mxu0 0
    %393 = vmatpush1.bf16.msra.mxu0 0
    %394 = vmatprep.subr.bf16.mxu0 0
    %395 = vmatpush1.bf16.msra.mxu0 0
    %396 = vmatprep.subr.bf16.mxu0 0
    %397 = vmatpush1.bf16.msra.mxu0 0
    %398 = vmatprep.subr.bf16.mxu0 0
    %399 = vmatpush1.bf16.msra.mxu0 0
    %400 = vmatprep.subr.bf16.mxu0 0
    %401 = vmatpush1.bf16.msra.mxu0 0
    %402 = vmatprep.subr.bf16.mxu0 0
    %403 = vmatpush1.bf16.msra.mxu0 0
    %404 = vmatprep.subr.bf16.mxu0 0
    %405 = vmatpush1.bf16.msra.mxu0 0
    %406 = vmatprep.subr.bf16.mxu0 0
    %407 = vmatpush1.bf16.msra.mxu0 0
    %408 = vmatprep.mubr.bf16.mxu0 0
    %409 = vmatmul.mubr.bf16.gmra.mrb[0].mxu0 %v300
    %v410 = vpop.f32.mrb[0].mxu0
    %v411 = vadd.f32 %v327, %v410
    %v412 = vpop.f32.mrb[0].mxu0
    %v413 = vpop.f32.mrb[0].mxu0
    %v414 = vadd.f32 %v327, %v413
    %v415 = vpop.f32.mrb[0].mxu0
    %416 = vmatprep.mubr.bf16.mxu0 0
    %417 = vmatmul.mubr.bf16.gmra.mrb[0].mxu0 %v301
    %v418 = vpop.f32.mrb[0].mxu0
    %v419 = vadd.f32 %v327, %v418
    %v420 = vpop.f32.mrb[0].mxu0
    %v421 = vpop.f32.mrb[0].mxu0
    %v422 = vadd.f32 %v327, %v421
    %v423 = vpop.f32.mrb[0].mxu0
    %424 = vmatprep.mubr.bf16.mxu0 0
    %425 = vmatmul.mubr.bf16.gmra.mrb[0].mxu0 %v302
    %v426 = vpop.f32.mrb[0].mxu0
    %v427 = vadd.f32 %v327, %v426
    %v428 = vpop.f32.mrb[0].mxu0
    %v429 = vpop.f32.mrb[0].mxu0
    %v430 = vadd.f32 %v327, %v429
    %v431 = vpop.f32.mrb[0].mxu0
    %432 = vmatprep.mubr.bf16.mxu0 0
    %433 = vmatmul.mubr.bf16.gmra.mrb[0].mxu0 %v303
    %v434 = vpop.f32.mrb[0].mxu0
    %v435 = vadd.f32 %v327, %v434
    %v436 = vpop.f32.mrb[0].mxu0
    %v437 = vpop.f32.mrb[0].mxu0
    %v438 = vadd.f32 %v327, %v437
    %v439 = vpop.f32.mrb[0].mxu0
    %440 = vmatprep.mubr.bf16.mxu0 0
    %441 = vmatmul.mubr.bf16.gmra.mrb[0].mxu0 %v304
    %v442 = vpop.f32.mrb[0].mxu0
    %v443 = vadd.f32 %v327, %v442
    %v444 = vpop.f32.mrb[0].mxu0
    %v445 = vpop.f32.mrb[0].mxu0
    %v446 = vadd.f32 %v327, %v445
    %v447 = vpop.f32.mrb[0].mxu0
    %448 = vmatprep.mubr.bf16.mxu0 0
    %449 = vmatmul.mubr.bf16.gmra.mrb[0].mxu0 %v305
    %v450 = vpop.f32.mrb[0].mxu0
    %v451 = vadd.f32 %v327, %v450
    %v452 = vpop.f32.mrb[0].mxu0
    %v453 = vpop.f32.mrb[0].mxu0
    %v454 = vadd.f32 %v327, %v453
    %v455 = vpop.f32.mrb[0].mxu0
    %456 = vmatprep.mubr.bf16.mxu0 0
    %457 = vmatmul.mubr.bf16.gmra.mrb[0].mxu0 %v306
    %v458 = vpop.f32.mrb[0].mxu0
    %v459 = vadd.f32 %v327, %v458
    %v460 = vpop.f32.mrb[0].mxu0
    %v461 = vpop.f32.mrb[0].mxu0
    %v462 = vadd.f32 %v327, %v461
    %v463 = vpop.f32.mrb[0].mxu0
    %464 = vmatprep.mubr.bf16.mxu0 0
    %465 = vmatmul.mubr.bf16.gmra.mrb[0].mxu0 %v307
    %v466 = vpop.f32.mrb[0].mxu0
    %v467 = vadd.f32 %v327, %v466
    %v468 = vpop.f32.mrb[0].mxu0
    %v469 = vpop.f32.mrb[0].mxu0
    %v470 = vadd.f32 %v327, %v469
    %v471 = vpop.f32.mrb[0].mxu0
    %472 = vdwg.mxu0
    %v473 = vmax.f32 %v411, 0.0
    %v474 = vmax.f32 %v414, 0.0
    %v475 = vmax.f32 %v419, 0.0
    %v476 = vmax.f32 %v422, 0.0
    %v477 = vmax.f32 %v427, 0.0
    %v478 = vmax.f32 %v430, 0.0
    %v479 = vmax.f32 %v435, 0.0
    %v480 = vmax.f32 %v438, 0.0
    %v481 = vmax.f32 %v443, 0.0
    %v482 = vmax.f32 %v446, 0.0
    %v483 = vmax.f32 %v451, 0.0
    %v484 = vmax.f32 %v454, 0.0
    %v485 = vmax.f32 %v459, 0.0
    %v486 = vmax.f32 %v462, 0.0
    %v487 = vmax.f32 %v467, 0.0
    %v488 = vmax.f32 %v470, 0.0
    %v489 = vpack.c.bf16 %v474, %v473
    %v490 = vpack.c.bf16 %v476, %v475
    %v491 = vpack.c.bf16 %v478, %v477
    %v492 = vpack.c.bf16 %v480, %v479
    %v493 = vpack.c.bf16 %v482, %v481
    %v494 = vpack.c.bf16 %v484, %v483
    %v495 = vpack.c.bf16 %v486, %v485
    %v496 = vpack.c.bf16 %v488, %v487
    %v497 = vld [vmem:[#allocation8] sm:$0xf]
    %v498 = vld [vmem:[#allocation8 + $0x4] sm:$0xf]
    %v499 = vld [vmem:[#allocation8 + $0x8] sm:$0xf]
    %v500 = vld [vmem:[#allocation8 + $0xc] sm:$0xf]
    %v501 = vld [vmem:[#allocation8 + $0x10] sm:$0xf]
    %v502 = vld [vmem:[#allocation8 + $0x14] sm:$0xf]
    %v503 = vld [vmem:[#allocation8 + $0x18] sm:$0xf]
    %v504 = vld [vmem:[#allocation8 + $0x1c] sm:$0xf]
    %v505 = vld [vmem:[#allocation8 + $0x20] sm:$0xf]
    %v506 = vld [vmem:[#allocation8 + $0x24] sm:$0xf]
    %v507 = vld [vmem:[#allocation8 + $0x28] sm:$0xf]
    %v508 = vld [vmem:[#allocation8 + $0x2c] sm:$0xf]
    %v509 = vld [vmem:[#allocation8 + $0x30] sm:$0xf]
    %v510 = vld [vmem:[#allocation8 + $0x34] sm:$0xf]
    %v511 = vld [vmem:[#allocation8 + $0x38] sm:$0xf]
    %v512 = vld [vmem:[#allocation8 + $0x3c] sm:$0xf]
    %v513 = vlaneseq
    %v514 = vshrl.u32 %v513, 7
    %v515 = vsub.s32 2, %v514
    %v516 = vrot.slane %v93, %v515
    %v533 = vunpack.c.l.b16 %v497
    %v534 = vunpack.c.l.b16 %v498
    %v535 = vunpack.c.l.b16 %v499
    %v536 = vunpack.c.l.b16 %v500
    %v537 = vunpack.c.l.b16 %v501
    %v538 = vunpack.c.l.b16 %v502
    %v539 = vunpack.c.l.b16 %v503
    %v540 = vunpack.c.l.b16 %v504
    %v541 = vunpack.c.l.b16 %v505
    %v542 = vunpack.c.l.b16 %v506
    %v543 = vunpack.c.l.b16 %v507
    %v544 = vunpack.c.l.b16 %v508
    %v545 = vunpack.c.l.b16 %v509
    %v546 = vunpack.c.l.b16 %v510
    %v547 = vunpack.c.l.b16 %v511
    %v548 = vunpack.c.l.b16 %v512
    %v549 = vpack.c.b16 %v534, %v533
    %v550 = vpack.c.b16 %v536, %v535
    %v551 = vpack.c.b16 %v538, %v537
    %v552 = vpack.c.b16 %v540, %v539
    %v553 = vpack.c.b16 %v542, %v541
    %v554 = vpack.c.b16 %v544, %v543
    %v555 = vpack.c.b16 %v546, %v545
    %v556 = vpack.c.b16 %v548, %v547
    %565 = vmatprep.subr.bf16.mxu0 0
    %566 = vmatpush1.bf16.msra.mxu0 %v549
    %567 = vmatprep.subr.bf16.mxu0 0
    %568 = vmatpush1.bf16.msra.mxu0 %v550
    %569 = vmatprep.subr.bf16.mxu0 0
    %570 = vmatpush1.bf16.msra.mxu0 %v551
    %571 = vmatprep.subr.bf16.mxu0 0
    %572 = vmatpush1.bf16.msra.mxu0 %v552
    %573 = vmatprep.subr.bf16.mxu0 0
    %574 = vmatpush1.bf16.msra.mxu0 %v553
    %575 = vmatprep.subr.bf16.mxu0 0
    %576 = vmatpush1.bf16.msra.mxu0 %v554
    %577 = vmatprep.subr.bf16.mxu0 0
    %578 = vmatpush1.bf16.msra.mxu0 %v555
    %579 = vmatprep.subr.bf16.mxu0 0
    %580 = vmatpush1.bf16.msra.mxu0 %v556
    %581 = vmatprep.subr.bf16.mxu0 0
    %582 = vmatpush1.bf16.msra.mxu0 0
    %583 = vmatprep.subr.bf16.mxu0 0
    %584 = vmatpush1.bf16.msra.mxu0 0
    %585 = vmatprep.subr.bf16.mxu0 0
    %586 = vmatpush1.bf16.msra.mxu0 0
    %587 = vmatprep.subr.bf16.mxu0 0
    %588 = vmatpush1.bf16.msra.mxu0 0
    %589 = vmatprep.subr.bf16.mxu0 0
    %590 = vmatpush1.bf16.msra.mxu0 0
    %591 = vmatprep.subr.bf16.mxu0 0
    %592 = vmatpush1.bf16.msra.mxu0 0
    %593 = vmatprep.subr.bf16.mxu0 0
    %594 = vmatpush1.bf16.msra.mxu0 0
    %595 = vmatprep.subr.bf16.mxu0 0
    %596 = vmatpush1.bf16.msra.mxu0 0
    %597 = vmatprep.mubr.bf16.mxu0 0
    %598 = vmatmul.mubr.bf16.gmra.mrb[0].mxu0 %v489
    %v599 = vpop.f32.mrb[0].mxu0
    %v600 = vadd.f32 %v516, %v599
    %v601 = vpop.f32.mrb[0].mxu0
    %v602 = vpop.f32.mrb[0].mxu0
    %v603 = vadd.f32 %v516, %v602
    %v604 = vpop.f32.mrb[0].mxu0
    %605 = vmatprep.mubr.bf16.mxu0 0
    %606 = vmatmul.mubr.bf16.gmra.mrb[0].mxu0 %v490
    %v607 = vpop.f32.mrb[0].mxu0
    %v608 = vadd.f32 %v516, %v607
    %v609 = vpop.f32.mrb[0].mxu0
    %v610 = vpop.f32.mrb[0].mxu0
    %v611 = vadd.f32 %v516, %v610
    %v612 = vpop.f32.mrb[0].mxu0
    %613 = vmatprep.mubr.bf16.mxu0 0
    %614 = vmatmul.mubr.bf16.gmra.mrb[0].mxu0 %v491
    %v615 = vpop.f32.mrb[0].mxu0
    %v616 = vadd.f32 %v516, %v615
    %v617 = vpop.f32.mrb[0].mxu0
    %v618 = vpop.f32.mrb[0].mxu0
    %v619 = vadd.f32 %v516, %v618
    %v620 = vpop.f32.mrb[0].mxu0
    %621 = vmatprep.mubr.bf16.mxu0 0
    %622 = vmatmul.mubr.bf16.gmra.mrb[0].mxu0 %v492
    %v623 = vpop.f32.mrb[0].mxu0
    %v624 = vadd.f32 %v516, %v623
    %v625 = vpop.f32.mrb[0].mxu0
    %v626 = vpop.f32.mrb[0].mxu0
    %v627 = vadd.f32 %v516, %v626
    %v628 = vpop.f32.mrb[0].mxu0
    %629 = vmatprep.mubr.bf16.mxu0 0
    %630 = vmatmul.mubr.bf16.gmra.mrb[0].mxu0 %v493
    %v631 = vpop.f32.mrb[0].mxu0
    %v632 = vadd.f32 %v516, %v631
    %v633 = vpop.f32.mrb[0].mxu0
    %v634 = vpop.f32.mrb[0].mxu0
    %v635 = vadd.f32 %v516, %v634
    %v636 = vpop.f32.mrb[0].mxu0
    %637 = vmatprep.mubr.bf16.mxu0 0
    %638 = vmatmul.mubr.bf16.gmra.mrb[0].mxu0 %v494
    %v639 = vpop.f32.mrb[0].mxu0
    %v640 = vadd.f32 %v516, %v639
    %v641 = vpop.f32.mrb[0].mxu0
    %v642 = vpop.f32.mrb[0].mxu0
    %v643 = vadd.f32 %v516, %v642
    %v644 = vpop.f32.mrb[0].mxu0
    %645 = vmatprep.mubr.bf16.mxu0 0
    %646 = vmatmul.mubr.bf16.gmra.mrb[0].mxu0 %v495
    %v647 = vpop.f32.mrb[0].mxu0
    %v648 = vadd.f32 %v516, %v647
    %v649 = vpop.f32.mrb[0].mxu0
    %v650 = vpop.f32.mrb[0].mxu0
    %v651 = vadd.f32 %v516, %v650
    %v652 = vpop.f32.mrb[0].mxu0
    %653 = vmatprep.mubr.bf16.mxu0 0
    %654 = vmatmul.mubr.bf16.gmra.mrb[0].mxu0 %v496
    %v655 = vpop.f32.mrb[0].mxu0
    %v656 = vadd.f32 %v516, %v655
    %v657 = vpop.f32.mrb[0].mxu0
    %v658 = vpop.f32.mrb[0].mxu0
    %v659 = vadd.f32 %v516, %v658
    %v660 = vpop.f32.mrb[0].mxu0
    %661 = vdwg.mxu0
    %v662 = vmax.f32 %v600, 0.0
    %v663 = vmax.f32 %v603, 0.0
    %v664 = vmax.f32 %v608, 0.0
    %v665 = vmax.f32 %v611, 0.0
    %v666 = vmax.f32 %v616, 0.0
    %v667 = vmax.f32 %v619, 0.0
    %v668 = vmax.f32 %v624, 0.0
    %v669 = vmax.f32 %v627, 0.0
    %v670 = vmax.f32 %v632, 0.0
    %v671 = vmax.f32 %v635, 0.0
    %v672 = vmax.f32 %v640, 0.0
    %v673 = vmax.f32 %v643, 0.0
    %v674 = vmax.f32 %v648, 0.0
    %v675 = vmax.f32 %v651, 0.0
    %v676 = vmax.f32 %v656, 0.0
    %v677 = vmax.f32 %v659, 0.0
    %v678 = vpack.c.bf16 %v663, %v662
    %v679 = vpack.c.bf16 %v665, %v664
    %v680 = vpack.c.bf16 %v667, %v666
    %v681 = vpack.c.bf16 %v669, %v668
    %v682 = vpack.c.bf16 %v671, %v670
    %v683 = vpack.c.bf16 %v673, %v672
    %v684 = vpack.c.bf16 %v675, %v674
    %v685 = vpack.c.bf16 %v677, %v676
    %v686 = vld [vmem:[#allocation10] sm:$0xf]
    %v687 = vld [vmem:[#allocation10 + $0x4] sm:$0xf]
    %v688 = vld [vmem:[#allocation10 + $0x8] sm:$0xf]
    %v689 = vld [vmem:[#allocation10 + $0xc] sm:$0xf]
    %v690 = vld [vmem:[#allocation10 + $0x10] sm:$0xf]
    %v691 = vld [vmem:[#allocation10 + $0x14] sm:$0xf]
    %v692 = vld [vmem:[#allocation10 + $0x18] sm:$0xf]
    %v693 = vld [vmem:[#allocation10 + $0x1c] sm:$0xf]
    %v694 = vld [vmem:[#allocation10 + $0x20] sm:$0xf]
    %v695 = vld [vmem:[#allocation10 + $0x24] sm:$0xf]
    %v696 = vld [vmem:[#allocation10 + $0x28] sm:$0xf]
    %v697 = vld [vmem:[#allocation10 + $0x2c] sm:$0xf]
    %v698 = vld [vmem:[#allocation10 + $0x30] sm:$0xf]
    %v699 = vld [vmem:[#allocation10 + $0x34] sm:$0xf]
    %v700 = vld [vmem:[#allocation10 + $0x38] sm:$0xf]
    %v701 = vld [vmem:[#allocation10 + $0x3c] sm:$0xf]
    %v702 = vlaneseq
    %v703 = vshrl.u32 %v702, 7
    %v704 = vsub.s32 3, %v703
    %v705 = vrot.slane %v93, %v704
    %v722 = vunpack.c.l.b16 %v686
    %v723 = vunpack.c.l.b16 %v687
    %v724 = vunpack.c.l.b16 %v688
    %v725 = vunpack.c.l.b16 %v689
    %v726 = vunpack.c.l.b16 %v690
    %v727 = vunpack.c.l.b16 %v691
    %v728 = vunpack.c.l.b16 %v692
    %v729 = vunpack.c.l.b16 %v693
    %v730 = vunpack.c.l.b16 %v694
    %v731 = vunpack.c.l.b16 %v695
    %v732 = vunpack.c.l.b16 %v696
    %v733 = vunpack.c.l.b16 %v697
    %v734 = vunpack.c.l.b16 %v698
    %v735 = vunpack.c.l.b16 %v699
    %v736 = vunpack.c.l.b16 %v700
    %v737 = vunpack.c.l.b16 %v701
    %v738 = vpack.c.b16 %v723, %v722
    %v739 = vpack.c.b16 %v725, %v724
    %v740 = vpack.c.b16 %v727, %v726
    %v741 = vpack.c.b16 %v729, %v728
    %v742 = vpack.c.b16 %v731, %v730
    %v743 = vpack.c.b16 %v733, %v732
    %v744 = vpack.c.b16 %v735, %v734
    %v745 = vpack.c.b16 %v737, %v736
    %754 = vmatprep.subr.bf16.mxu0 0
    %755 = vmatpush1.bf16.msra.mxu0 %v738
    %756 = vmatprep.subr.bf16.mxu0 0
    %757 = vmatpush1.bf16.msra.mxu0 %v739
    %758 = vmatprep.subr.bf16.mxu0 0
    %759 = vmatpush1.bf16.msra.mxu0 %v740
    %760 = vmatprep.subr.bf16.mxu0 0
    %761 = vmatpush1.bf16.msra.mxu0 %v741
    %762 = vmatprep.subr.bf16.mxu0 0
    %763 = vmatpush1.bf16.msra.mxu0 %v742
    %764 = vmatprep.subr.bf16.mxu0 0
    %765 = vmatpush1.bf16.msra.mxu0 %v743
    %766 = vmatprep.subr.bf16.mxu0 0
    %767 = vmatpush1.bf16.msra.mxu0 %v744
    %768 = vmatprep.subr.bf16.mxu0 0
    %769 = vmatpush1.bf16.msra.mxu0 %v745
    %770 = vmatprep.subr.bf16.mxu0 0
    %771 = vmatpush1.bf16.msra.mxu0 0
    %772 = vmatprep.subr.bf16.mxu0 0
    %773 = vmatpush1.bf16.msra.mxu0 0
    %774 = vmatprep.subr.bf16.mxu0 0
    %775 = vmatpush1.bf16.msra.mxu0 0
    %776 = vmatprep.subr.bf16.mxu0 0
    %777 = vmatpush1.bf16.msra.mxu0 0
    %778 = vmatprep.subr.bf16.mxu0 0
    %779 = vmatpush1.bf16.msra.mxu0 0
    %780 = vmatprep.subr.bf16.mxu0 0
    %781 = vmatpush1.bf16.msra.mxu0 0
    %782 = vmatprep.subr.bf16.mxu0 0
    %783 = vmatpush1.bf16.msra.mxu0 0
    %784 = vmatprep.subr.bf16.mxu0 0
    %785 = vmatpush1.bf16.msra.mxu0 0
    %786 = vmatprep.mubr.bf16.mxu0 0
    %787 = vmatmul.mubr.bf16.gmra.mrb[0].mxu0 %v678
    %v788 = vpop.f32.mrb[0].mxu0
    %v789 = vadd.f32 %v705, %v788
    %v790 = vpop.f32.mrb[0].mxu0
    %v791 = vpop.f32.mrb[0].mxu0
    %v792 = vadd.f32 %v705, %v791
    %v793 = vpop.f32.mrb[0].mxu0
    %794 = vmatprep.mubr.bf16.mxu0 0
    %795 = vmatmul.mubr.bf16.gmra.mrb[0].mxu0 %v679
    %v796 = vpop.f32.mrb[0].mxu0
    %v797 = vadd.f32 %v705, %v796
    %v798 = vpop.f32.mrb[0].mxu0
    %v799 = vpop.f32.mrb[0].mxu0
    %v800 = vadd.f32 %v705, %v799
    %v801 = vpop.f32.mrb[0].mxu0
    %802 = vmatprep.mubr.bf16.mxu0 0
    %803 = vmatmul.mubr.bf16.gmra.mrb[0].mxu0 %v680
    %v804 = vpop.f32.mrb[0].mxu0
    %v805 = vadd.f32 %v705, %v804
    %v806 = vpop.f32.mrb[0].mxu0
    %v807 = vpop.f32.mrb[0].mxu0
    %v808 = vadd.f32 %v705, %v807
    %v809 = vpop.f32.mrb[0].mxu0
    %810 = vmatprep.mubr.bf16.mxu0 0
    %811 = vmatmul.mubr.bf16.gmra.mrb[0].mxu0 %v681
    %v812 = vpop.f32.mrb[0].mxu0
    %v813 = vadd.f32 %v705, %v812
    %v814 = vpop.f32.mrb[0].mxu0
    %v815 = vpop.f32.mrb[0].mxu0
    %v816 = vadd.f32 %v705, %v815
    %v817 = vpop.f32.mrb[0].mxu0
    %818 = vmatprep.mubr.bf16.mxu0 0
    %819 = vmatmul.mubr.bf16.gmra.mrb[0].mxu0 %v682
    %v820 = vpop.f32.mrb[0].mxu0
    %v821 = vadd.f32 %v705, %v820
    %v822 = vpop.f32.mrb[0].mxu0
    %v823 = vpop.f32.mrb[0].mxu0
    %v824 = vadd.f32 %v705, %v823
    %v825 = vpop.f32.mrb[0].mxu0
    %826 = vmatprep.mubr.bf16.mxu0 0
    %827 = vmatmul.mubr.bf16.gmra.mrb[0].mxu0 %v683
    %v828 = vpop.f32.mrb[0].mxu0
    %v829 = vadd.f32 %v705, %v828
    %v830 = vpop.f32.mrb[0].mxu0
    %v831 = vpop.f32.mrb[0].mxu0
    %v832 = vadd.f32 %v705, %v831
    %v833 = vpop.f32.mrb[0].mxu0
    %834 = vmatprep.mubr.bf16.mxu0 0
    %835 = vmatmul.mubr.bf16.gmra.mrb[0].mxu0 %v684
    %v836 = vpop.f32.mrb[0].mxu0
    %v837 = vadd.f32 %v705, %v836
    %v838 = vpop.f32.mrb[0].mxu0
    %v839 = vpop.f32.mrb[0].mxu0
    %v840 = vadd.f32 %v705, %v839
    %v841 = vpop.f32.mrb[0].mxu0
    %842 = vmatprep.mubr.bf16.mxu0 0
    %843 = vmatmul.mubr.bf16.gmra.mrb[0].mxu0 %v685
    %v844 = vpop.f32.mrb[0].mxu0
    %v845 = vadd.f32 %v705, %v844
    %v846 = vpop.f32.mrb[0].mxu0
    %v847 = vpop.f32.mrb[0].mxu0
    %v848 = vadd.f32 %v705, %v847
    %v849 = vpop.f32.mrb[0].mxu0
    %850 = vdwg.mxu0
    %851 = vmax.xlane.f32.xlu0 %v789
    %v852 = vpop.xlane.xlu0 %851
    %853 = vmax.xlane.f32.xlu0 %v792
    %v854 = vpop.xlane.xlu0 %853
    %855 = vmax.xlane.f32.xlu0 %v797
    %v856 = vpop.xlane.xlu0 %855
    %857 = vmax.xlane.f32.xlu0 %v800
    %v858 = vpop.xlane.xlu0 %857
    %859 = vmax.xlane.f32.xlu0 %v805
    %v860 = vpop.xlane.xlu0 %859
    %861 = vmax.xlane.f32.xlu0 %v808
    %v862 = vpop.xlane.xlu0 %861
    %863 = vmax.xlane.f32.xlu0 %v813
    %v864 = vpop.xlane.xlu0 %863
    %865 = vmax.xlane.f32.xlu0 %v816
    %v866 = vpop.xlane.xlu0 %865
    %867 = vmax.xlane.f32.xlu0 %v821
    %v868 = vpop.xlane.xlu0 %867
    %869 = vmax.xlane.f32.xlu0 %v824
    %v870 = vpop.xlane.xlu0 %869
    %871 = vmax.xlane.f32.xlu0 %v829
    %v872 = vpop.xlane.xlu0 %871
    %873 = vmax.xlane.f32.xlu0 %v832
    %v874 = vpop.xlane.xlu0 %873
    %875 = vmax.xlane.f32.xlu0 %v837
    %v876 = vpop.xlane.xlu0 %875
    %877 = vmax.xlane.f32.xlu0 %v840
    %v878 = vpop.xlane.xlu0 %877
    %879 = vmax.xlane.f32.xlu0 %v845
    %v880 = vpop.xlane.xlu0 %879
    %881 = vmax.xlane.f32.xlu0 %v848
    %v882 = vpop.xlane.xlu0 %881
    %v883 = vsub.f32 %v789, %v852
    %v884 = vsub.f32 %v792, %v854
    %v885 = vsub.f32 %v797, %v856
    %v886 = vsub.f32 %v800, %v858
    %v887 = vsub.f32 %v805, %v860
    %v888 = vsub.f32 %v808, %v862
    %v889 = vsub.f32 %v813, %v864
    %v890 = vsub.f32 %v816, %v866
    %v891 = vsub.f32 %v821, %v868
    %v892 = vsub.f32 %v824, %v870
    %v893 = vsub.f32 %v829, %v872
    %v894 = vsub.f32 %v832, %v874
    %v895 = vsub.f32 %v837, %v876
    %v896 = vsub.f32 %v840, %v878
    %v897 = vsub.f32 %v845, %v880
    %v898 = vsub.f32 %v848, %v882
    %v899 = vmul.f32 %v883, 1.442695
    %v900 = vpow.pop %v899
    %v901 = vmul.f32 %v884, 1.442695
    %v902 = vpow.pop %v901
    %v903 = vmul.f32 %v885, 1.442695
    %v904 = vpow.pop %v903
    %v905 = vmul.f32 %v886, 1.442695
    %v906 = vpow.pop %v905
    %v907 = vmul.f32 %v887, 1.442695
    %v908 = vpow.pop %v907
    %v909 = vmul.f32 %v888, 1.442695
    %v910 = vpow.pop %v909
    %v911 = vmul.f32 %v889, 1.442695
    %v912 = vpow.pop %v911
    %v913 = vmul.f32 %v890, 1.442695
    %v914 = vpow.pop %v913
    %v915 = vmul.f32 %v891, 1.442695
    %v916 = vpow.pop %v915
    %v917 = vmul.f32 %v892, 1.442695
    %v918 = vpow.pop %v917
    %v919 = vmul.f32 %v893, 1.442695
    %v920 = vpow.pop %v919
    %v921 = vmul.f32 %v894, 1.442695
    %v922 = vpow.pop %v921
    %v923 = vmul.f32 %v895, 1.442695
    %v924 = vpow.pop %v923
    %v925 = vmul.f32 %v896, 1.442695
    %v926 = vpow.pop %v925
    %v927 = vmul.f32 %v897, 1.442695
    %v928 = vpow.pop %v927
    %v929 = vmul.f32 %v898, 1.442695
    %v930 = vpow.pop %v929
    %931 = vadd.xlane.f32.xlu0 %v900
    %v932 = vpop.xlane.xlu0 %931
    %933 = vadd.xlane.f32.xlu0 %v902
    %v934 = vpop.xlane.xlu0 %933
    %935 = vadd.xlane.f32.xlu0 %v904
    %v936 = vpop.xlane.xlu0 %935
    %937 = vadd.xlane.f32.xlu0 %v906
    %v938 = vpop.xlane.xlu0 %937
    %939 = vadd.xlane.f32.xlu0 %v908
    %v940 = vpop.xlane.xlu0 %939
    %941 = vadd.xlane.f32.xlu0 %v910
    %v942 = vpop.xlane.xlu0 %941
    %943 = vadd.xlane.f32.xlu0 %v912
    %v944 = vpop.xlane.xlu0 %943
    %945 = vadd.xlane.f32.xlu0 %v914
    %v946 = vpop.xlane.xlu0 %945
    %947 = vadd.xlane.f32.xlu0 %v916
    %v948 = vpop.xlane.xlu0 %947
    %949 = vadd.xlane.f32.xlu0 %v918
    %v950 = vpop.xlane.xlu0 %949
    %951 = vadd.xlane.f32.xlu0 %v920
    %v952 = vpop.xlane.xlu0 %951
    %953 = vadd.xlane.f32.xlu0 %v922
    %v954 = vpop.xlane.xlu0 %953
    %955 = vadd.xlane.f32.xlu0 %v924
    %v956 = vpop.xlane.xlu0 %955
    %957 = vadd.xlane.f32.xlu0 %v926
    %v958 = vpop.xlane.xlu0 %957
    %959 = vadd.xlane.f32.xlu0 %v928
    %v960 = vpop.xlane.xlu0 %959
    %961 = vadd.xlane.f32.xlu0 %v930
    %v962 = vpop.xlane.xlu0 %961
    %v963 = vrcp.pop %v932
    %v964 = vrcp.pop %v934
    %v965 = vrcp.pop %v936
    %v966 = vrcp.pop %v938
    %v967 = vrcp.pop %v940
    %v968 = vrcp.pop %v942
    %v969 = vrcp.pop %v944
    %v970 = vrcp.pop %v946
    %v971 = vrcp.pop %v948
    %v972 = vrcp.pop %v950
    %v973 = vrcp.pop %v952
    %v974 = vrcp.pop %v954
    %v975 = vrcp.pop %v956
    %v976 = vrcp.pop %v958
    %v977 = vrcp.pop %v960
    %v978 = vrcp.pop %v962
    %v979 = vmul.f32 %v900, %v963
    %v980 = vmul.f32 %v902, %v964
    %v981 = vmul.f32 %v904, %v965
    %v982 = vmul.f32 %v906, %v966
    %v983 = vmul.f32 %v908, %v967
    %v984 = vmul.f32 %v910, %v968
    %v985 = vmul.f32 %v912, %v969
    %v986 = vmul.f32 %v914, %v970
    %v987 = vmul.f32 %v916, %v971
    %v988 = vmul.f32 %v918, %v972
    %v989 = vmul.f32 %v920, %v973
    %v990 = vmul.f32 %v922, %v974
    %v991 = vmul.f32 %v924, %v975
    %v992 = vmul.f32 %v926, %v976
    %v993 = vmul.f32 %v928, %v977
    %v994 = vmul.f32 %v930, %v978
    %v995 = vpack.c.bf16 %v980, %v979
    %v996 = vpack.c.bf16 %v982, %v981
    %v997 = vpack.c.bf16 %v984, %v983
    %v998 = vpack.c.bf16 %v986, %v985
    %v999 = vpack.c.bf16 %v988, %v987
    %v1000 = vpack.c.bf16 %v990, %v989
    %v1001 = vpack.c.bf16 %v992, %v991
    %v1002 = vpack.c.bf16 %v994, %v993
    %v1011 = vunpack.c.l.b16 %v995
    %v1012 = vunpack.c.h.b16 %v995
    %v1013 = vunpack.c.l.b16 %v996
    %v1014 = vunpack.c.h.b16 %v996
    %v1015 = vunpack.c.l.b16 %v997
    %v1016 = vunpack.c.h.b16 %v997
    %v1017 = vunpack.c.l.b16 %v998
    %v1018 = vunpack.c.h.b16 %v998
    %v1019 = vunpack.c.l.b16 %v999
    %v1020 = vunpack.c.h.b16 %v999
    %v1021 = vunpack.c.l.b16 %v1000
    %v1022 = vunpack.c.h.b16 %v1000
    %v1023 = vunpack.c.l.b16 %v1001
    %v1024 = vunpack.c.h.b16 %v1001
    %v1025 = vunpack.c.l.b16 %v1002
    %v1026 = vunpack.c.h.b16 %v1002
    %v1027 = vpack.c.b16 %v1011, %v1011
    %v1028 = vpack.c.b16 %v1012, %v1012
    %v1029 = vpack.c.b16 %v1013, %v1013
    %v1030 = vpack.c.b16 %v1014, %v1014
    %v1031 = vpack.c.b16 %v1015, %v1015
    %v1032 = vpack.c.b16 %v1016, %v1016
    %v1033 = vpack.c.b16 %v1017, %v1017
    %v1034 = vpack.c.b16 %v1018, %v1018
    %v1035 = vpack.c.b16 %v1019, %v1019
    %v1036 = vpack.c.b16 %v1020, %v1020
    %v1037 = vpack.c.b16 %v1021, %v1021
    %v1038 = vpack.c.b16 %v1022, %v1022
    %v1039 = vpack.c.b16 %v1023, %v1023
    %v1040 = vpack.c.b16 %v1024, %v1024
    %v1041 = vpack.c.b16 %v1025, %v1025
    %v1042 = vpack.c.b16 %v1026, %v1026
    %1059 = vst [vmem:[#allocation11] sm:$0xf] %v1027
    %1060 = vst [vmem:[#allocation11 + $0x4] sm:$0xf] %v1028
    %1061 = vst [vmem:[#allocation11 + $0x8] sm:$0xf] %v1029
    %1062 = vst [vmem:[#allocation11 + $0xc] sm:$0xf] %v1030
    %1063 = vst [vmem:[#allocation11 + $0x10] sm:$0xf] %v1031
    %1064 = vst [vmem:[#allocation11 + $0x14] sm:$0xf] %v1032
    %1065 = vst [vmem:[#allocation11 + $0x18] sm:$0xf] %v1033
    %1066 = vst [vmem:[#allocation11 + $0x1c] sm:$0xf] %v1034
    %1067 = vst [vmem:[#allocation11 + $0x20] sm:$0xf] %v1035
    %1068 = vst [vmem:[#allocation11 + $0x24] sm:$0xf] %v1036
    %1069 = vst [vmem:[#allocation11 + $0x28] sm:$0xf] %v1037
    %1070 = vst [vmem:[#allocation11 + $0x2c] sm:$0xf] %v1038
    %1071 = vst [vmem:[#allocation11 + $0x30] sm:$0xf] %v1039
    %1072 = vst [vmem:[#allocation11 + $0x34] sm:$0xf] %v1040
    %1073 = vst [vmem:[#allocation11 + $0x38] sm:$0xf] %v1041
    %1074 = vst [vmem:[#allocation11 + $0x3c] sm:$0xf] %v1042
    // Predicated region
    $region46: #{tpu_custom_call.1} parent=1 // pred_check
      _
    $region47: #{tpu_custom_call.1} parent=1 // pred_check_branch
      %1076 = sbr.rel (0) target = $region49
    $region48: #{tpu_custom_call.1} parent=1 // pred_region
      %s1078 = ssub.s32 1024, 64
      %1079 = vsyncadd [#allocation4], %s1078
      %s1080 = sshll.u32 [#allocation11], 4
      %s1081 = int_to_ptr.vmem [resolvable:$true] %s1080
      %1086 = dma.vmem_to_hbm [thread:$0]  %s1081, 64, %s6, [#allocation4], 64, 64, 4
    $region49: #{tpu_custom_call.1} parent=1 // pred_fallthru
      _
    // Predicated region
    $region50: #{tpu_custom_call.1} parent=1 // pred_check
      _
    $region51: #{tpu_custom_call.1} parent=1 // pred_check_branch
      %1088 = sbr.rel (0) target = $region53
    $region52: #{tpu_custom_call.1} parent=1 // pred_region
      %1089 = dma.done [#allocation4], 1024
    $region53: #{tpu_custom_call.1} parent=1 // pred_fallthru
      _
    %1090 = vsyncpa [#allocation3], 1
    %1091 = vsyncpa [#allocation6], 1
    %1092 = vsyncpa [#allocation9], 1
    %1093 = vsyncpa [#allocation4], 1

</llo_original>
